<compile_context>
chip_gen: v5e
topology: v5e:2x2
jax: 0.10.0
libtpu: 0.0.40
codegen_flags: <defaults>
</compile_context>

<pallas_src>
import numpy as np
import jax
import jax.numpy as jnp
from jax.experimental import pallas as pl
from jax.experimental.pallas import tpu as pltpu


NUM_LAYERS = 8        # linear layers in the nn.Sequential
OUT_DIM = 7           # age buckets


def _layer_dims(embed_dim):
    e = int(embed_dim)
    return [e, 2 * e, 4 * e, 2 * e, 2 * e, e, e, e // 2, OUT_DIM]


def _round_up(x, m):
    return ((x + m - 1) // m) * m


def age_disc_kernel(x_ref, w_ref, b_ref, out_ref):
    """x: (TB, E) f32, w: (L, PAD, PAD) bf16 zero-padded, b: (L, 1, PAD) f32.

    Computes log_softmax(MLP(x)) over the first OUT_DIM columns and writes
    (TB, OUT_DIM) f32. Padded weight rows/cols are zero, so padded activation
    columns stay exactly zero through every layer.
    """
    e = x_ref.shape[-1]
    h = x_ref[...].astype(jnp.float32)                       # (TB, E)

    for i in range(NUM_LAYERS):                              # static unroll
        w = w_ref[i]                                         # (PAD, PAD) bf16
        if i == 0:
            w = w[:e, :]                                     # (E, PAD), static slice
        b = b_ref[i]                                         # (1, PAD) f32
        h = jnp.dot(h.astype(jnp.bfloat16), w,
                    preferred_element_type=jnp.float32)      # f32 accumulate
        h = h + b
        if i < NUM_LAYERS - 1:
            h = jnp.maximum(h, 0.2 * h)                      # LeakyReLU(0.2)
            # TODO(synk): nn.Dropout(p=0.3) is identity at inference; training-mode
            # stochastic dropout is intentionally omitted from the kernel.

    logits = h[:, :OUT_DIM]                                  # real class columns
    m = jnp.max(logits, axis=-1, keepdims=True)
    shifted = logits - m
    lse = jnp.log(jnp.sum(jnp.exp(shifted), axis=-1, keepdims=True))
    out_ref[...] = shifted - lse


def init_params(embed_dim, key):
    """Deterministic init matching the nn.Sequential layer sizes (f32)."""
    dims = _layer_dims(embed_dim)
    ws, bs = [], []
    for i in range(NUM_LAYERS):
        fan_in, fan_out = dims[i], dims[i + 1]
        key, kw, kb = jax.random.split(key, 3)
        bound = 1.0 / np.sqrt(fan_in)
        ws.append(jax.random.uniform(kw, (fan_in, fan_out), jnp.float32,
                                     minval=-bound, maxval=bound))
        bs.append(jax.random.uniform(kb, (fan_out,), jnp.float32,
                                     minval=-bound, maxval=bound))
    return ws, bs


def pack_params(ws, bs, embed_dim):
    """Zero-pad all layers into one bf16 weight slab and one f32 bias slab."""
    dims = _layer_dims(embed_dim)
    pad = _round_up(max(dims), 128)
    w_pack = np.zeros((NUM_LAYERS, pad, pad), np.float32)
    b_pack = np.zeros((NUM_LAYERS, 1, pad), np.float32)
    for i, (w, b) in enumerate(zip(ws, bs)):
        fi, fo = dims[i], dims[i + 1]
        w_pack[i, :fi, :fo] = np.asarray(w)
        b_pack[i, 0, :fo] = np.asarray(b).reshape(-1)
    return (jnp.asarray(w_pack, dtype=jnp.bfloat16),
            jnp.asarray(b_pack, dtype=jnp.float32),
            pad)


def make_users_sensitive(attribute_data):
    reindex = {1: 0, 18: 1, 25: 2, 35: 3, 45: 4, 50: 5, 56: 6}
    inds = [reindex.get(n, n) for n in attribute_data]
    return jnp.asarray(np.ascontiguousarray(inds), dtype=jnp.int32)


def age_discriminator_forward(ents_emb, ents, w_pack, b_pack, users_sensitive):
    """Returns (log_softmax(net(ents_emb)).squeeze(), A_labels)."""
    B, E = ents_emb.shape
    L, PAD, _ = w_pack.shape

    # Batch tile: 128 rows for large batches (good MXU occupancy), otherwise
    # the whole (8-aligned) batch in one block.
    TB = 128 if B >= 128 else _round_up(max(B, 1), 8)
    B_pad = _round_up(B, TB)
    x = ents_emb if B_pad == B else jnp.pad(ents_emb, ((0, B_pad - B), (0, 0)))
    n_blocks = B_pad // TB

    flops = 2 * B_pad * NUM_LAYERS * PAD * PAD
    bytes_accessed = (x.size * 4 + w_pack.size * 2 + b_pack.size * 4
                      + B_pad * OUT_DIM * 4)

    out = pl.pallas_call(
        age_disc_kernel,
        out_shape=jax.ShapeDtypeStruct((B_pad, OUT_DIM), jnp.float32),
        grid=(n_blocks,),
        in_specs=[
            pl.BlockSpec((TB, E), lambda i: (i, 0)),            # x: tiled over batch
            pl.BlockSpec((L, PAD, PAD), lambda i: (0, 0, 0)),   # packed weights (resident)
            pl.BlockSpec((L, 1, PAD), lambda i: (0, 0, 0)),     # packed biases (resident)
        ],
        out_specs=pl.BlockSpec((TB, OUT_DIM), lambda i: (i, 0)),
        compiler_params=pltpu.CompilerParams(
            dimension_semantics=("parallel",)),
        cost_estimate=pl.CostEstimate(flops=flops,
                                      transcendentals=B_pad * OUT_DIM,
                                      bytes_accessed=bytes_accessed),
    )(x, w_pack, b_pack)

    out = out[:B]
    a_labels = jnp.take(users_sensitive, ents, axis=0)
    return jnp.squeeze(out), a_labels


def _reference_forward(ents_emb, w_pack, b_pack, embed_dim):
    """Plain-JAX reference using the same bf16 weights / f32 accumulation."""
    e = int(embed_dim)
    h = ents_emb.astype(jnp.float32)
    for i in range(NUM_LAYERS):
        w = w_pack[i]
        if i == 0:
            w = w[:e, :]
        h = jnp.dot(h.astype(jnp.bfloat16), w,
                    preferred_element_type=jnp.float32) + b_pack[i]
        if i < NUM_LAYERS - 1:
            h = jnp.maximum(h, 0.2 * h)
    logits = h[:, :OUT_DIM]
    return jax.nn.log_softmax(logits, axis=-1)


if __name__ == "__main__":
    key = jax.random.PRNGKey(0)

    embed_dim = 32
    batch = 8
    num_users = 20

    # Synthetic age attribute data (the values MovieLens-style ages take).
    age_values = np.array([1, 18, 25, 35, 45, 50, 56], dtype=np.int64)
    rng = np.random.RandomState(0)
    attribute_data = age_values[rng.randint(0, len(age_values), size=num_users)].tolist()
    users_sensitive = make_users_sensitive(attribute_data)

    # Parameters (deterministic) packed into slabs.
    kp, kx, ke = jax.random.split(key, 3)
    ws, bs = init_params(embed_dim, kp)
    w_pack, b_pack, _ = pack_params(ws, bs, embed_dim)

    # Inputs.
    ents_emb = jax.random.normal(kx, (batch, embed_dim), dtype=jnp.float32)
    ents = jax.random.randint(ke, (batch,), 0, num_users, dtype=jnp.int32)

    output, a_labels = age_discriminator_forward(ents_emb, ents, w_pack, b_pack,
                                                 users_sensitive)
    output = jax.block_until_ready(output)
    a_labels = jax.block_until_ready(a_labels)

    # Sanity checks: shapes, valid log-probabilities, and match vs. JAX reference.
    assert output.shape == (batch, OUT_DIM)
    assert a_labels.shape == (batch,)
    probs_sum = jnp.sum(jnp.exp(output), axis=-1)
    assert bool(jnp.all(jnp.abs(probs_sum - 1.0) < 1e-4))
    ref = _reference_forward(ents_emb, w_pack, b_pack, embed_dim)
    assert bool(jnp.max(jnp.abs(output - ref)) < 1e-2)

    print("KERNEL_OK")
</pallas_src>

<mosaic_0001>
module attributes {stable_mosaic.version = 11 : i64} {
  func.func @age_disc_kernel(%arg0: i32, %arg1: memref<8x32xf32, #tpu.memory_space<vmem>>, %arg2: memref<8x128x128xbf16, #tpu.memory_space<vmem>>, %arg3: memref<8x1x128xf32, #tpu.memory_space<vmem>>, %arg4: memref<8x7xf32, #tpu.memory_space<vmem>>) attributes {dimension_semantics = [#tpu.dimension_semantics<parallel>], iteration_bounds = array<i64: 1>, scalar_prefetch = 0 : i64, scratch_operands = 0 : i64, tpu.core_type = #tpu.core_type<tc>, window_params = [{transform_indices = @transform_0, window_bounds = array<i64: 8, 32>}, {pipeline_mode = #tpu.pipeline_mode<synchronous>, transform_indices = @transform_1, window_bounds = array<i64: 8, 128, 128>}, {pipeline_mode = #tpu.pipeline_mode<synchronous>, transform_indices = @transform_2, window_bounds = array<i64: 8, 1, 128>}, {transform_indices = @transform_3, window_bounds = array<i64: 8, 7>}]} {
    %c0 = arith.constant 0 : index
    %c0_0 = arith.constant 0 : index
    %0 = vector.load %arg1[%c0, %c0_0] : memref<8x32xf32, #tpu.memory_space<vmem>>, vector<8x32xf32>
    %c0_1 = arith.constant 0 : index
    %c0_2 = arith.constant 0 : index
    %c0_3 = arith.constant 0 : index
    %1 = vector.load %arg2[%c0_1, %c0_2, %c0_3] : memref<8x128x128xbf16, #tpu.memory_space<vmem>>, vector<1x128x128xbf16>
    %2 = vector.shape_cast %1 : vector<1x128x128xbf16> to vector<128x128xbf16>
    %3 = vector.extract_strided_slice %2 {offsets = [0, 0], sizes = [32, 128], strides = [1, 1]} : vector<128x128xbf16> to vector<32x128xbf16>
    %c0_4 = arith.constant 0 : index
    %c0_5 = arith.constant 0 : index
    %c0_6 = arith.constant 0 : index
    %4 = vector.load %arg3[%c0_4, %c0_5, %c0_6] : memref<8x1x128xf32, #tpu.memory_space<vmem>>, vector<1x1x128xf32>
    %5 = vector.shape_cast %4 : vector<1x1x128xf32> to vector<1x128xf32>
    %6 = arith.truncf %0 : vector<8x32xf32> to vector<8x32xbf16>
    %cst = arith.constant dense<0.000000e+00> : vector<8x128xf32>
    %7 = tpu.matmul %6, %3, %cst {dimension_numbers = #tpu.dot_dimension_numbers<[1], [0], [0], [1], [0, 0, 1, 1], [], []>} : vector<8x32xbf16>, vector<32x128xbf16>, vector<8x128xf32> -> vector<8x128xf32>
    %8 = vector.broadcast %5 : vector<1x128xf32> to vector<8x128xf32>
    %9 = arith.addf %7, %8 : vector<8x128xf32>
    %cst_7 = arith.constant 2.000000e-01 : f32
    %10 = vector.broadcast %cst_7 : f32 to vector<8x128xf32>
    %11 = arith.mulf %10, %9 : vector<8x128xf32>
    %12 = arith.maximumf %9, %11 : vector<8x128xf32>
    %c1 = arith.constant 1 : index
    %c0_8 = arith.constant 0 : index
    %c0_9 = arith.constant 0 : index
    %13 = vector.load %arg2[%c1, %c0_8, %c0_9] : memref<8x128x128xbf16, #tpu.memory_space<vmem>>, vector<1x128x128xbf16>
    %14 = vector.shape_cast %13 : vector<1x128x128xbf16> to vector<128x128xbf16>
    %c1_10 = arith.constant 1 : index
    %c0_11 = arith.constant 0 : index
    %c0_12 = arith.constant 0 : index
    %15 = vector.load %arg3[%c1_10, %c0_11, %c0_12] : memref<8x1x128xf32, #tpu.memory_space<vmem>>, vector<1x1x128xf32>
    %16 = vector.shape_cast %15 : vector<1x1x128xf32> to vector<1x128xf32>
    %17 = arith.truncf %12 : vector<8x128xf32> to vector<8x128xbf16>
    %cst_13 = arith.constant dense<0.000000e+00> : vector<8x128xf32>
    %18 = tpu.matmul %17, %14, %cst_13 {dimension_numbers = #tpu.dot_dimension_numbers<[1], [0], [0], [1], [0, 0, 1, 1], [], []>} : vector<8x128xbf16>, vector<128x128xbf16>, vector<8x128xf32> -> vector<8x128xf32>
    %19 = vector.broadcast %16 : vector<1x128xf32> to vector<8x128xf32>
    %20 = arith.addf %18, %19 : vector<8x128xf32>
    %cst_14 = arith.constant 2.000000e-01 : f32
    %21 = vector.broadcast %cst_14 : f32 to vector<8x128xf32>
    %22 = arith.mulf %21, %20 : vector<8x128xf32>
    %23 = arith.maximumf %20, %22 : vector<8x128xf32>
    %c2 = arith.constant 2 : index
    %c0_15 = arith.constant 0 : index
    %c0_16 = arith.constant 0 : index
    %24 = vector.load %arg2[%c2, %c0_15, %c0_16] : memref<8x128x128xbf16, #tpu.memory_space<vmem>>, vector<1x128x128xbf16>
    %25 = vector.shape_cast %24 : vector<1x128x128xbf16> to vector<128x128xbf16>
    %c2_17 = arith.constant 2 : index
    %c0_18 = arith.constant 0 : index
    %c0_19 = arith.constant 0 : index
    %26 = vector.load %arg3[%c2_17, %c0_18, %c0_19] : memref<8x1x128xf32, #tpu.memory_space<vmem>>, vector<1x1x128xf32>
    %27 = vector.shape_cast %26 : vector<1x1x128xf32> to vector<1x128xf32>
    %28 = arith.truncf %23 : vector<8x128xf32> to vector<8x128xbf16>
    %cst_20 = arith.constant dense<0.000000e+00> : vector<8x128xf32>
    %29 = tpu.matmul %28, %25, %cst_20 {dimension_numbers = #tpu.dot_dimension_numbers<[1], [0], [0], [1], [0, 0, 1, 1], [], []>} : vector<8x128xbf16>, vector<128x128xbf16>, vector<8x128xf32> -> vector<8x128xf32>
    %30 = vector.broadcast %27 : vector<1x128xf32> to vector<8x128xf32>
    %31 = arith.addf %29, %30 : vector<8x128xf32>
    %cst_21 = arith.constant 2.000000e-01 : f32
    %32 = vector.broadcast %cst_21 : f32 to vector<8x128xf32>
    %33 = arith.mulf %32, %31 : vector<8x128xf32>
    %34 = arith.maximumf %31, %33 : vector<8x128xf32>
    %c3 = arith.constant 3 : index
    %c0_22 = arith.constant 0 : index
    %c0_23 = arith.constant 0 : index
    %35 = vector.load %arg2[%c3, %c0_22, %c0_23] : memref<8x128x128xbf16, #tpu.memory_space<vmem>>, vector<1x128x128xbf16>
    %36 = vector.shape_cast %35 : vector<1x128x128xbf16> to vector<128x128xbf16>
    %c3_24 = arith.constant 3 : index
    %c0_25 = arith.constant 0 : index
    %c0_26 = arith.constant 0 : index
    %37 = vector.load %arg3[%c3_24, %c0_25, %c0_26] : memref<8x1x128xf32, #tpu.memory_space<vmem>>, vector<1x1x128xf32>
    %38 = vector.shape_cast %37 : vector<1x1x128xf32> to vector<1x128xf32>
    %39 = arith.truncf %34 : vector<8x128xf32> to vector<8x128xbf16>
    %cst_27 = arith.constant dense<0.000000e+00> : vector<8x128xf32>
    %40 = tpu.matmul %39, %36, %cst_27 {dimension_numbers = #tpu.dot_dimension_numbers<[1], [0], [0], [1], [0, 0, 1, 1], [], []>} : vector<8x128xbf16>, vector<128x128xbf16>, vector<8x128xf32> -> vector<8x128xf32>
    %41 = vector.broadcast %38 : vector<1x128xf32> to vector<8x128xf32>
    %42 = arith.addf %40, %41 : vector<8x128xf32>
    %cst_28 = arith.constant 2.000000e-01 : f32
    %43 = vector.broadcast %cst_28 : f32 to vector<8x128xf32>
    %44 = arith.mulf %43, %42 : vector<8x128xf32>
    %45 = arith.maximumf %42, %44 : vector<8x128xf32>
    %c4 = arith.constant 4 : index
    %c0_29 = arith.constant 0 : index
    %c0_30 = arith.constant 0 : index
    %46 = vector.load %arg2[%c4, %c0_29, %c0_30] : memref<8x128x128xbf16, #tpu.memory_space<vmem>>, vector<1x128x128xbf16>
    %47 = vector.shape_cast %46 : vector<1x128x128xbf16> to vector<128x128xbf16>
    %c4_31 = arith.constant 4 : index
    %c0_32 = arith.constant 0 : index
    %c0_33 = arith.constant 0 : index
    %48 = vector.load %arg3[%c4_31, %c0_32, %c0_33] : memref<8x1x128xf32, #tpu.memory_space<vmem>>, vector<1x1x128xf32>
    %49 = vector.shape_cast %48 : vector<1x1x128xf32> to vector<1x128xf32>
    %50 = arith.truncf %45 : vector<8x128xf32> to vector<8x128xbf16>
    %cst_34 = arith.constant dense<0.000000e+00> : vector<8x128xf32>
    %51 = tpu.matmul %50, %47, %cst_34 {dimension_numbers = #tpu.dot_dimension_numbers<[1], [0], [0], [1], [0, 0, 1, 1], [], []>} : vector<8x128xbf16>, vector<128x128xbf16>, vector<8x128xf32> -> vector<8x128xf32>
    %52 = vector.broadcast %49 : vector<1x128xf32> to vector<8x128xf32>
    %53 = arith.addf %51, %52 : vector<8x128xf32>
    %cst_35 = arith.constant 2.000000e-01 : f32
    %54 = vector.broadcast %cst_35 : f32 to vector<8x128xf32>
    %55 = arith.mulf %54, %53 : vector<8x128xf32>
    %56 = arith.maximumf %53, %55 : vector<8x128xf32>
    %c5 = arith.constant 5 : index
    %c0_36 = arith.constant 0 : index
    %c0_37 = arith.constant 0 : index
    %57 = vector.load %arg2[%c5, %c0_36, %c0_37] : memref<8x128x128xbf16, #tpu.memory_space<vmem>>, vector<1x128x128xbf16>
    %58 = vector.shape_cast %57 : vector<1x128x128xbf16> to vector<128x128xbf16>
    %c5_38 = arith.constant 5 : index
    %c0_39 = arith.constant 0 : index
    %c0_40 = arith.constant 0 : index
    %59 = vector.load %arg3[%c5_38, %c0_39, %c0_40] : memref<8x1x128xf32, #tpu.memory_space<vmem>>, vector<1x1x128xf32>
    %60 = vector.shape_cast %59 : vector<1x1x128xf32> to vector<1x128xf32>
    %61 = arith.truncf %56 : vector<8x128xf32> to vector<8x128xbf16>
    %cst_41 = arith.constant dense<0.000000e+00> : vector<8x128xf32>
    %62 = tpu.matmul %61, %58, %cst_41 {dimension_numbers = #tpu.dot_dimension_numbers<[1], [0], [0], [1], [0, 0, 1, 1], [], []>} : vector<8x128xbf16>, vector<128x128xbf16>, vector<8x128xf32> -> vector<8x128xf32>
    %63 = vector.broadcast %60 : vector<1x128xf32> to vector<8x128xf32>
    %64 = arith.addf %62, %63 : vector<8x128xf32>
    %cst_42 = arith.constant 2.000000e-01 : f32
    %65 = vector.broadcast %cst_42 : f32 to vector<8x128xf32>
    %66 = arith.mulf %65, %64 : vector<8x128xf32>
    %67 = arith.maximumf %64, %66 : vector<8x128xf32>
    %c6 = arith.constant 6 : index
    %c0_43 = arith.constant 0 : index
    %c0_44 = arith.constant 0 : index
    %68 = vector.load %arg2[%c6, %c0_43, %c0_44] : memref<8x128x128xbf16, #tpu.memory_space<vmem>>, vector<1x128x128xbf16>
    %69 = vector.shape_cast %68 : vector<1x128x128xbf16> to vector<128x128xbf16>
    %c6_45 = arith.constant 6 : index
    %c0_46 = arith.constant 0 : index
    %c0_47 = arith.constant 0 : index
    %70 = vector.load %arg3[%c6_45, %c0_46, %c0_47] : memref<8x1x128xf32, #tpu.memory_space<vmem>>, vector<1x1x128xf32>
    %71 = vector.shape_cast %70 : vector<1x1x128xf32> to vector<1x128xf32>
    %72 = arith.truncf %67 : vector<8x128xf32> to vector<8x128xbf16>
    %cst_48 = arith.constant dense<0.000000e+00> : vector<8x128xf32>
    %73 = tpu.matmul %72, %69, %cst_48 {dimension_numbers = #tpu.dot_dimension_numbers<[1], [0], [0], [1], [0, 0, 1, 1], [], []>} : vector<8x128xbf16>, vector<128x128xbf16>, vector<8x128xf32> -> vector<8x128xf32>
    %74 = vector.broadcast %71 : vector<1x128xf32> to vector<8x128xf32>
    %75 = arith.addf %73, %74 : vector<8x128xf32>
    %cst_49 = arith.constant 2.000000e-01 : f32
    %76 = vector.broadcast %cst_49 : f32 to vector<8x128xf32>
    %77 = arith.mulf %76, %75 : vector<8x128xf32>
    %78 = arith.maximumf %75, %77 : vector<8x128xf32>
    %c7 = arith.constant 7 : index
    %c0_50 = arith.constant 0 : index
    %c0_51 = arith.constant 0 : index
    %79 = vector.load %arg2[%c7, %c0_50, %c0_51] : memref<8x128x128xbf16, #tpu.memory_space<vmem>>, vector<1x128x128xbf16>
    %80 = vector.shape_cast %79 : vector<1x128x128xbf16> to vector<128x128xbf16>
    %c7_52 = arith.constant 7 : index
    %c0_53 = arith.constant 0 : index
    %c0_54 = arith.constant 0 : index
    %81 = vector.load %arg3[%c7_52, %c0_53, %c0_54] : memref<8x1x128xf32, #tpu.memory_space<vmem>>, vector<1x1x128xf32>
    %82 = vector.shape_cast %81 : vector<1x1x128xf32> to vector<1x128xf32>
    %83 = arith.truncf %78 : vector<8x128xf32> to vector<8x128xbf16>
    %cst_55 = arith.constant dense<0.000000e+00> : vector<8x128xf32>
    %84 = tpu.matmul %83, %80, %cst_55 {dimension_numbers = #tpu.dot_dimension_numbers<[1], [0], [0], [1], [0, 0, 1, 1], [], []>} : vector<8x128xbf16>, vector<128x128xbf16>, vector<8x128xf32> -> vector<8x128xf32>
    %85 = vector.broadcast %82 : vector<1x128xf32> to vector<8x128xf32>
    %86 = arith.addf %84, %85 : vector<8x128xf32>
    %87 = vector.extract_strided_slice %86 {offsets = [0, 0], sizes = [8, 7], strides = [1, 1]} : vector<8x128xf32> to vector<8x7xf32>
    %cst_56 = arith.constant dense<0xFF800000> : vector<8xf32>
    %88 = vector.multi_reduction <maximumf>, %87, %cst_56 [1] : vector<8x7xf32> to vector<8xf32>
    %89 = vector.shape_cast %88 : vector<8xf32> to vector<8x1xf32>
    %90 = vector.broadcast %89 : vector<8x1xf32> to vector<8x7xf32>
    %91 = arith.subf %87, %90 : vector<8x7xf32>
    %92 = math.exp %91 : vector<8x7xf32>
    %cst_57 = arith.constant dense<0.000000e+00> : vector<8xf32>
    %93 = vector.multi_reduction <add>, %92, %cst_57 [1] : vector<8x7xf32> to vector<8xf32>
    %94 = vector.shape_cast %93 : vector<8xf32> to vector<8x1xf32>
    %95 = math.log %94 : vector<8x1xf32>
    %96 = vector.broadcast %95 : vector<8x1xf32> to vector<8x7xf32>
    %97 = arith.subf %91, %96 : vector<8x7xf32>
    %c0_58 = arith.constant 0 : index
    %c0_59 = arith.constant 0 : index
    %98 = vector.load %arg4[%c0_58, %c0_59] : memref<8x7xf32, #tpu.memory_space<vmem>>, vector<8x7xf32>
    tpu.vector_store %arg4[%c0_58, %c0_59], %97 {strides = array<i32>} : memref<8x7xf32, #tpu.memory_space<vmem>>, vector<8x7xf32>,
    return
  }
  func.func @transform_0(%arg0: i32) -> (i32, i32) {
    %c0_i32 = arith.constant 0 : i32
    %c0_i32_0 = arith.constant 0 : i32
    return %arg0, %c0_i32 : i32, i32
  }
  func.func @transform_1(%arg0: i32) -> (i32, i32, i32) {
    %c0_i32 = arith.constant 0 : i32
    %c0_i32_0 = arith.constant 0 : i32
    %c0_i32_1 = arith.constant 0 : i32
    %c0_i32_2 = arith.constant 0 : i32
    return %c0_i32, %c0_i32_0, %c0_i32_1 : i32, i32, i32
  }
  func.func @transform_2(%arg0: i32) -> (i32, i32, i32) {
    %c0_i32 = arith.constant 0 : i32
    %c0_i32_0 = arith.constant 0 : i32
    %c0_i32_1 = arith.constant 0 : i32
    %c0_i32_2 = arith.constant 0 : i32
    return %c0_i32, %c0_i32_0, %c0_i32_1 : i32, i32, i32
  }
  func.func @transform_3(%arg0: i32) -> (i32, i32) {
    %c0_i32 = arith.constant 0 : i32
    %c0_i32_0 = arith.constant 0 : i32
    return %arg0, %c0_i32 : i32, i32
  }
}

</mosaic_0001>

<llo_original>
// kernel: tpu_custom_call.1
$region0: #{tpu_custom_call.1}
  #allocation0 [shape = 'u32[]', space=smem, size = 0x4, offset = 0x4, fixed_abs, tag = 'smem constant byte address 0x4 - core index']
  #allocation1 [shape = 'u32[72,128]{1,0:T(1,128)}', space=vmem, size = 0x9000, scoped, tag = 'internal scratch']
  %s0 = inlined_call_operand.hbm [shape: f32[8,32], index: 0, kind: input, shape index: {}]
  %s1 = inlined_call_operand.hbm [shape: bf16[8,128,128], index: 1, kind: input, shape index: {}]
  %s2 = inlined_call_operand.hbm [shape: f32[8,1,128], index: 2, kind: input, shape index: {}]
  %s3 = inlined_call_operand.hbm [shape: f32[8,7], index: 3, kind: output, shape index: {}]
  %s4 = sld [smem:[#allocation0]]
  $region34: #{tpu_custom_call.1} parent=0
    _
  %s6 = ssub.s32 1, %s4
  %s7 = scalar_select 0, %s6, %s4
  $region1: #{tpu_custom_call.1} parent=0
    #allocation2 [shape = 'u8[4096]{0}', space=vmem, size = 0x1000, scoped, tag = 'input window, operand 0, single buffered']
    #allocation3 [shape = 's32[1]{0}', space=sflag, size = 0x4, scoped, tag = 'scoped memory for tpu_custom_call.1']
    #allocation4 [shape = 's32[1]{0}', space=sflag, size = 0x4, scoped, tag = 'scoped memory for tpu_custom_call.1']
    #allocation5 [shape = 'u8[262144]{0}', space=vmem, size = 0x40000, scoped, tag = 'input window, operand 1, single buffered']
    #allocation6 [shape = 's32[1]{0}', space=sflag, size = 0x4, scoped, tag = 'scoped memory for tpu_custom_call.1']
    #allocation7 [shape = 'u8[4096]{0}', space=vmem, size = 0x1000, scoped, tag = 'input window, operand 2, single buffered']
    #allocation8 [shape = 'u8[4096]{0}', space=vmem, size = 0x1000, scoped, tag = 'output window, operand 0, single buffered']
    %8 = vsyncpa [#allocation3], 0
    %9 = vsyncpa [#allocation6], 0
    %10 = vsyncpa [#allocation4], 0
    // Predicated region
    $region2: #{tpu_custom_call.1} parent=1 // pred_check
      _
    $region3: #{tpu_custom_call.1} parent=1 // pred_check_branch
      %12 = sbr.rel (0) target = $region5
    $region4: #{tpu_custom_call.1} parent=1 // pred_region
      %14 = vsyncadd [#allocation3], 0
      %s16 = sshll.u32 %s0, 4
      %s17 = int_to_ptr.hbm [resolvable:$true] %s16
      %s18 = sshll.u32 [#allocation2], 4
      %s19 = int_to_ptr.vmem [resolvable:$true] %s18
      %21 = dma.hbm_to_vmem [thread:$0]  %s17, 128, %s19, [#allocation3]
    $region5: #{tpu_custom_call.1} parent=1 // pred_fallthru
      _
    // Predicated region
    $region6: #{tpu_custom_call.1} parent=1 // pred_check
      _
    $region7: #{tpu_custom_call.1} parent=1 // pred_check_branch
      %23 = sbr.rel (0) target = $region9
    $region8: #{tpu_custom_call.1} parent=1 // pred_region
      %25 = vsyncadd [#allocation6], 0
      %s26 = sshll.u32 %s1, 4
      %s27 = int_to_ptr.hbm [resolvable:$true] %s26
      %s28 = sshll.u32 [#allocation5], 4
      %s29 = int_to_ptr.vmem [resolvable:$true] %s28
      %34 = dma.hbm_to_vmem [thread:$0]  %s27, 8192, %s29, [#allocation6], 64, 64, 4
    $region9: #{tpu_custom_call.1} parent=1 // pred_fallthru
      _
    // Predicated region
    $region10: #{tpu_custom_call.1} parent=1 // pred_check
      _
    $region11: #{tpu_custom_call.1} parent=1 // pred_check_branch
      %36 = sbr.rel (0) target = $region13
    $region12: #{tpu_custom_call.1} parent=1 // pred_region
      %38 = vsyncadd [#allocation6], 0
      %s39 = sshll.u32 %s2, 4
      %s40 = int_to_ptr.hbm [resolvable:$true] %s39
      %s41 = sshll.u32 [#allocation7], 4
      %s42 = int_to_ptr.vmem [resolvable:$true] %s41
      %47 = dma.hbm_to_vmem [thread:$0]  %s40, 128, %s42, [#allocation6], 16, 16, 1
    $region13: #{tpu_custom_call.1} parent=1 // pred_fallthru
      _
    // Predicated region
    $region14: #{tpu_custom_call.1} parent=1 // pred_check
      _
    $region15: #{tpu_custom_call.1} parent=1 // pred_check_branch
      %49 = sbr.rel (0) target = $region17
    $region16: #{tpu_custom_call.1} parent=1 // pred_region
      %51 = dma.done [#allocation3], 128
    $region17: #{tpu_custom_call.1} parent=1 // pred_fallthru
      _
    // Predicated region
    $region18: #{tpu_custom_call.1} parent=1 // pred_check
      _
    $region19: #{tpu_custom_call.1} parent=1 // pred_check_branch
      %53 = sbr.rel (0) target = $region21
    $region20: #{tpu_custom_call.1} parent=1 // pred_region
      %55 = dma.done [#allocation6], 8192
    $region21: #{tpu_custom_call.1} parent=1 // pred_fallthru
      _
    // Predicated region
    $region22: #{tpu_custom_call.1} parent=1 // pred_check
      _
    $region23: #{tpu_custom_call.1} parent=1 // pred_check_branch
      %57 = sbr.rel (0) target = $region25
    $region24: #{tpu_custom_call.1} parent=1 // pred_region
      %59 = dma.done [#allocation6], 128
    $region25: #{tpu_custom_call.1} parent=1 // pred_fallthru
      _
    %v61 = vld [vmem:[#allocation2] sm:$0xff]
    %v62 = vld [vmem:[#allocation5] sm:$0xf]
    %v63 = vld [vmem:[#allocation5 + $0x4] sm:$0xf]
    %v64 = vld [vmem:[#allocation5 + $0x8] sm:$0xf]
    %v65 = vld [vmem:[#allocation5 + $0xc] sm:$0xf]
    %v66 = vld [vmem:[#allocation7] sm:$0x1]
    %v67 = vpack.c.bf16 %v61, %v61
    %v69 = vperm.slane %v66, 0
    %v75 = vunpack.c.l.b16 %v62
    %v76 = vunpack.c.l.b16 %v63
    %v77 = vunpack.c.l.b16 %v64
    %v78 = vunpack.c.l.b16 %v65
    %v79 = vpack.c.b16 %v76, %v75
    %v80 = vpack.c.b16 %v78, %v77
    %vm83 = vcmask 261120
    %v85 = vsel %vm83, %v67, 0
    %87 = vmatpush.bf16.msra.mxu0 0
    %88 = vmatpush.bf16.msra.mxu0 0
    %89 = vmatpush.bf16.msra.mxu0 0
    %90 = vmatpush.bf16.msra.mxu0 0
    %91 = vmatpush.bf16.msra.mxu0 0
    %92 = vmatpush.bf16.msra.mxu0 0
    %93 = vmatpush.bf16.msra.mxu0 %v80
    %94 = vmatpush.bf16.msra.mxu0 %v79
    %95 = vmatmul.bf16.gmra.mxu0 %v85
    %v96 = vpop.f32.mrf.mxu0
    %v97 = vadd.f32 %v69, %v96
    %v98 = vpop.f32.mrf.mxu0
    %99 = vdwg.mxu0
    %v100 = vmul.f32 %v97, 0.2
    %v101 = vmax.f32 %v97, %v100
    %s102 = scalar_lea.vmem [#allocation5], 64
    %v103 = vld [vmem:[%s102] sm:$0xf]
    %v104 = vld [vmem:[%s102 + $0x4] sm:$0xf]
    %v105 = vld [vmem:[%s102 + $0x8] sm:$0xf]
    %v106 = vld [vmem:[%s102 + $0xc] sm:$0xf]
    %v107 = vld [vmem:[%s102 + $0x10] sm:$0xf]
    %v108 = vld [vmem:[%s102 + $0x14] sm:$0xf]
    %v109 = vld [vmem:[%s102 + $0x18] sm:$0xf]
    %v110 = vld [vmem:[%s102 + $0x1c] sm:$0xf]
    %v111 = vld [vmem:[%s102 + $0x20] sm:$0xf]
    %v112 = vld [vmem:[%s102 + $0x24] sm:$0xf]
    %v113 = vld [vmem:[%s102 + $0x28] sm:$0xf]
    %v114 = vld [vmem:[%s102 + $0x2c] sm:$0xf]
    %v115 = vld [vmem:[%s102 + $0x30] sm:$0xf]
    %v116 = vld [vmem:[%s102 + $0x34] sm:$0xf]
    %v117 = vld [vmem:[%s102 + $0x38] sm:$0xf]
    %v118 = vld [vmem:[%s102 + $0x3c] sm:$0xf]
    %s119 = scalar_lea.vmem [#allocation7], 1
    %v120 = vld [vmem:[%s119] sm:$0x1]
    %v121 = vpack.c.bf16 %v101, %v101
    %v123 = vperm.slane %v120, 0
    %v141 = vunpack.c.l.b16 %v103
    %v142 = vunpack.c.l.b16 %v104
    %v143 = vunpack.c.l.b16 %v105
    %v144 = vunpack.c.l.b16 %v106
    %v145 = vunpack.c.l.b16 %v107
    %v146 = vunpack.c.l.b16 %v108
    %v147 = vunpack.c.l.b16 %v109
    %v148 = vunpack.c.l.b16 %v110
    %v149 = vunpack.c.l.b16 %v111
    %v150 = vunpack.c.l.b16 %v112
    %v151 = vunpack.c.l.b16 %v113
    %v152 = vunpack.c.l.b16 %v114
    %v153 = vunpack.c.l.b16 %v115
    %v154 = vunpack.c.l.b16 %v116
    %v155 = vunpack.c.l.b16 %v117
    %v156 = vunpack.c.l.b16 %v118
    %v157 = vpack.c.b16 %v142, %v141
    %v158 = vpack.c.b16 %v144, %v143
    %v159 = vpack.c.b16 %v146, %v145
    %v160 = vpack.c.b16 %v148, %v147
    %v161 = vpack.c.b16 %v150, %v149
    %v162 = vpack.c.b16 %v152, %v151
    %v163 = vpack.c.b16 %v154, %v153
    %v164 = vpack.c.b16 %v156, %v155
    %173 = vmatpush.bf16.msra.mxu0 %v164
    %174 = vmatpush.bf16.msra.mxu0 %v163
    %175 = vmatpush.bf16.msra.mxu0 %v162
    %176 = vmatpush.bf16.msra.mxu0 %v161
    %177 = vmatpush.bf16.msra.mxu0 %v160
    %178 = vmatpush.bf16.msra.mxu0 %v159
    %179 = vmatpush.bf16.msra.mxu0 %v158
    %180 = vmatpush.bf16.msra.mxu0 %v157
    %181 = vmatmul.bf16.gmra.mxu0 %v121
    %v182 = vpop.f32.mrf.mxu0
    %v183 = vadd.f32 %v123, %v182
    %v184 = vpop.f32.mrf.mxu0
    %185 = vdwg.mxu0
    %v186 = vmul.f32 %v183, 0.2
    %v187 = vmax.f32 %v183, %v186
    %s188 = scalar_lea.vmem [#allocation5], 128
    %v189 = vld [vmem:[%s188] sm:$0xf]
    %v190 = vld [vmem:[%s188 + $0x4] sm:$0xf]
    %v191 = vld [vmem:[%s188 + $0x8] sm:$0xf]
    %v192 = vld [vmem:[%s188 + $0xc] sm:$0xf]
    %v193 = vld [vmem:[%s188 + $0x10] sm:$0xf]
    %v194 = vld [vmem:[%s188 + $0x14] sm:$0xf]
    %v195 = vld [vmem:[%s188 + $0x18] sm:$0xf]
    %v196 = vld [vmem:[%s188 + $0x1c] sm:$0xf]
    %v197 = vld [vmem:[%s188 + $0x20] sm:$0xf]
    %v198 = vld [vmem:[%s188 + $0x24] sm:$0xf]
    %v199 = vld [vmem:[%s188 + $0x28] sm:$0xf]
    %v200 = vld [vmem:[%s188 + $0x2c] sm:$0xf]
    %v201 = vld [vmem:[%s188 + $0x30] sm:$0xf]
    %v202 = vld [vmem:[%s188 + $0x34] sm:$0xf]
    %v203 = vld [vmem:[%s188 + $0x38] sm:$0xf]
    %v204 = vld [vmem:[%s188 + $0x3c] sm:$0xf]
    %s205 = scalar_lea.vmem [#allocation7], 2
    %v206 = vld [vmem:[%s205] sm:$0x1]
    %v207 = vpack.c.bf16 %v187, %v187
    %v209 = vperm.slane %v206, 0
    %v227 = vunpack.c.l.b16 %v189
    %v228 = vunpack.c.l.b16 %v190
    %v229 = vunpack.c.l.b16 %v191
    %v230 = vunpack.c.l.b16 %v192
    %v231 = vunpack.c.l.b16 %v193
    %v232 = vunpack.c.l.b16 %v194
    %v233 = vunpack.c.l.b16 %v195
    %v234 = vunpack.c.l.b16 %v196
    %v235 = vunpack.c.l.b16 %v197
    %v236 = vunpack.c.l.b16 %v198
    %v237 = vunpack.c.l.b16 %v199
    %v238 = vunpack.c.l.b16 %v200
    %v239 = vunpack.c.l.b16 %v201
    %v240 = vunpack.c.l.b16 %v202
    %v241 = vunpack.c.l.b16 %v203
    %v242 = vunpack.c.l.b16 %v204
    %v243 = vpack.c.b16 %v228, %v227
    %v244 = vpack.c.b16 %v230, %v229
    %v245 = vpack.c.b16 %v232, %v231
    %v246 = vpack.c.b16 %v234, %v233
    %v247 = vpack.c.b16 %v236, %v235
    %v248 = vpack.c.b16 %v238, %v237
    %v249 = vpack.c.b16 %v240, %v239
    %v250 = vpack.c.b16 %v242, %v241
    %259 = vmatpush.bf16.msra.mxu0 %v250
    %260 = vmatpush.bf16.msra.mxu0 %v249
    %261 = vmatpush.bf16.msra.mxu0 %v248
    %262 = vmatpush.bf16.msra.mxu0 %v247
    %263 = vmatpush.bf16.msra.mxu0 %v246
    %264 = vmatpush.bf16.msra.mxu0 %v245
    %265 = vmatpush.bf16.msra.mxu0 %v244
    %266 = vmatpush.bf16.msra.mxu0 %v243
    %267 = vmatmul.bf16.gmra.mxu0 %v207
    %v268 = vpop.f32.mrf.mxu0
    %v269 = vadd.f32 %v209, %v268
    %v270 = vpop.f32.mrf.mxu0
    %271 = vdwg.mxu0
    %v272 = vmul.f32 %v269, 0.2
    %v273 = vmax.f32 %v269, %v272
    %s274 = scalar_lea.vmem [#allocation5], 192
    %v275 = vld [vmem:[%s274] sm:$0xf]
    %v276 = vld [vmem:[%s274 + $0x4] sm:$0xf]
    %v277 = vld [vmem:[%s274 + $0x8] sm:$0xf]
    %v278 = vld [vmem:[%s274 + $0xc] sm:$0xf]
    %v279 = vld [vmem:[%s274 + $0x10] sm:$0xf]
    %v280 = vld [vmem:[%s274 + $0x14] sm:$0xf]
    %v281 = vld [vmem:[%s274 + $0x18] sm:$0xf]
    %v282 = vld [vmem:[%s274 + $0x1c] sm:$0xf]
    %v283 = vld [vmem:[%s274 + $0x20] sm:$0xf]
    %v284 = vld [vmem:[%s274 + $0x24] sm:$0xf]
    %v285 = vld [vmem:[%s274 + $0x28] sm:$0xf]
    %v286 = vld [vmem:[%s274 + $0x2c] sm:$0xf]
    %v287 = vld [vmem:[%s274 + $0x30] sm:$0xf]
    %v288 = vld [vmem:[%s274 + $0x34] sm:$0xf]
    %v289 = vld [vmem:[%s274 + $0x38] sm:$0xf]
    %v290 = vld [vmem:[%s274 + $0x3c] sm:$0xf]
    %s291 = scalar_lea.vmem [#allocation7], 3
    %v292 = vld [vmem:[%s291] sm:$0x1]
    %v293 = vpack.c.bf16 %v273, %v273
    %v295 = vperm.slane %v292, 0
    %v313 = vunpack.c.l.b16 %v275
    %v314 = vunpack.c.l.b16 %v276
    %v315 = vunpack.c.l.b16 %v277
    %v316 = vunpack.c.l.b16 %v278
    %v317 = vunpack.c.l.b16 %v279
    %v318 = vunpack.c.l.b16 %v280
    %v319 = vunpack.c.l.b16 %v281
    %v320 = vunpack.c.l.b16 %v282
    %v321 = vunpack.c.l.b16 %v283
    %v322 = vunpack.c.l.b16 %v284
    %v323 = vunpack.c.l.b16 %v285
    %v324 = vunpack.c.l.b16 %v286
    %v325 = vunpack.c.l.b16 %v287
    %v326 = vunpack.c.l.b16 %v288
    %v327 = vunpack.c.l.b16 %v289
    %v328 = vunpack.c.l.b16 %v290
    %v329 = vpack.c.b16 %v314, %v313
    %v330 = vpack.c.b16 %v316, %v315
    %v331 = vpack.c.b16 %v318, %v317
    %v332 = vpack.c.b16 %v320, %v319
    %v333 = vpack.c.b16 %v322, %v321
    %v334 = vpack.c.b16 %v324, %v323
    %v335 = vpack.c.b16 %v326, %v325
    %v336 = vpack.c.b16 %v328, %v327
    %345 = vmatpush.bf16.msra.mxu0 %v336
    %346 = vmatpush.bf16.msra.mxu0 %v335
    %347 = vmatpush.bf16.msra.mxu0 %v334
    %348 = vmatpush.bf16.msra.mxu0 %v333
    %349 = vmatpush.bf16.msra.mxu0 %v332
    %350 = vmatpush.bf16.msra.mxu0 %v331
    %351 = vmatpush.bf16.msra.mxu0 %v330
    %352 = vmatpush.bf16.msra.mxu0 %v329
    %353 = vmatmul.bf16.gmra.mxu0 %v293
    %v354 = vpop.f32.mrf.mxu0
    %v355 = vadd.f32 %v295, %v354
    %v356 = vpop.f32.mrf.mxu0
    %357 = vdwg.mxu0
    %v358 = vmul.f32 %v355, 0.2
    %v359 = vmax.f32 %v355, %v358
    %s360 = scalar_lea.vmem [#allocation5], 256
    %v361 = vld [vmem:[%s360] sm:$0xf]
    %v362 = vld [vmem:[%s360 + $0x4] sm:$0xf]
    %v363 = vld [vmem:[%s360 + $0x8] sm:$0xf]
    %v364 = vld [vmem:[%s360 + $0xc] sm:$0xf]
    %v365 = vld [vmem:[%s360 + $0x10] sm:$0xf]
    %v366 = vld [vmem:[%s360 + $0x14] sm:$0xf]
    %v367 = vld [vmem:[%s360 + $0x18] sm:$0xf]
    %v368 = vld [vmem:[%s360 + $0x1c] sm:$0xf]
    %v369 = vld [vmem:[%s360 + $0x20] sm:$0xf]
    %v370 = vld [vmem:[%s360 + $0x24] sm:$0xf]
    %v371 = vld [vmem:[%s360 + $0x28] sm:$0xf]
    %v372 = vld [vmem:[%s360 + $0x2c] sm:$0xf]
    %v373 = vld [vmem:[%s360 + $0x30] sm:$0xf]
    %v374 = vld [vmem:[%s360 + $0x34] sm:$0xf]
    %v375 = vld [vmem:[%s360 + $0x38] sm:$0xf]
    %v376 = vld [vmem:[%s360 + $0x3c] sm:$0xf]
    %s377 = scalar_lea.vmem [#allocation7], 4
    %v378 = vld [vmem:[%s377] sm:$0x1]
    %v379 = vpack.c.bf16 %v359, %v359
    %v381 = vperm.slane %v378, 0
    %v399 = vunpack.c.l.b16 %v361
    %v400 = vunpack.c.l.b16 %v362
    %v401 = vunpack.c.l.b16 %v363
    %v402 = vunpack.c.l.b16 %v364
    %v403 = vunpack.c.l.b16 %v365
    %v404 = vunpack.c.l.b16 %v366
    %v405 = vunpack.c.l.b16 %v367
    %v406 = vunpack.c.l.b16 %v368
    %v407 = vunpack.c.l.b16 %v369
    %v408 = vunpack.c.l.b16 %v370
    %v409 = vunpack.c.l.b16 %v371
    %v410 = vunpack.c.l.b16 %v372
    %v411 = vunpack.c.l.b16 %v373
    %v412 = vunpack.c.l.b16 %v374
    %v413 = vunpack.c.l.b16 %v375
    %v414 = vunpack.c.l.b16 %v376
    %v415 = vpack.c.b16 %v400, %v399
    %v416 = vpack.c.b16 %v402, %v401
    %v417 = vpack.c.b16 %v404, %v403
    %v418 = vpack.c.b16 %v406, %v405
    %v419 = vpack.c.b16 %v408, %v407
    %v420 = vpack.c.b16 %v410, %v409
    %v421 = vpack.c.b16 %v412, %v411
    %v422 = vpack.c.b16 %v414, %v413
    %431 = vmatpush.bf16.msra.mxu0 %v422
    %432 = vmatpush.bf16.msra.mxu0 %v421
    %433 = vmatpush.bf16.msra.mxu0 %v420
    %434 = vmatpush.bf16.msra.mxu0 %v419
    %435 = vmatpush.bf16.msra.mxu0 %v418
    %436 = vmatpush.bf16.msra.mxu0 %v417
    %437 = vmatpush.bf16.msra.mxu0 %v416
    %438 = vmatpush.bf16.msra.mxu0 %v415
    %439 = vmatmul.bf16.gmra.mxu0 %v379
    %v440 = vpop.f32.mrf.mxu0
    %v441 = vadd.f32 %v381, %v440
    %v442 = vpop.f32.mrf.mxu0
    %443 = vdwg.mxu0
    %v444 = vmul.f32 %v441, 0.2
    %v445 = vmax.f32 %v441, %v444
    %s446 = scalar_lea.vmem [#allocation5], 320
    %v447 = vld [vmem:[%s446] sm:$0xf]
    %v448 = vld [vmem:[%s446 + $0x4] sm:$0xf]
    %v449 = vld [vmem:[%s446 + $0x8] sm:$0xf]
    %v450 = vld [vmem:[%s446 + $0xc] sm:$0xf]
    %v451 = vld [vmem:[%s446 + $0x10] sm:$0xf]
    %v452 = vld [vmem:[%s446 + $0x14] sm:$0xf]
    %v453 = vld [vmem:[%s446 + $0x18] sm:$0xf]
    %v454 = vld [vmem:[%s446 + $0x1c] sm:$0xf]
    %v455 = vld [vmem:[%s446 + $0x20] sm:$0xf]
    %v456 = vld [vmem:[%s446 + $0x24] sm:$0xf]
    %v457 = vld [vmem:[%s446 + $0x28] sm:$0xf]
    %v458 = vld [vmem:[%s446 + $0x2c] sm:$0xf]
    %v459 = vld [vmem:[%s446 + $0x30] sm:$0xf]
    %v460 = vld [vmem:[%s446 + $0x34] sm:$0xf]
    %v461 = vld [vmem:[%s446 + $0x38] sm:$0xf]
    %v462 = vld [vmem:[%s446 + $0x3c] sm:$0xf]
    %s463 = scalar_lea.vmem [#allocation7], 5
    %v464 = vld [vmem:[%s463] sm:$0x1]
    %v465 = vpack.c.bf16 %v445, %v445
    %v467 = vperm.slane %v464, 0
    %v485 = vunpack.c.l.b16 %v447
    %v486 = vunpack.c.l.b16 %v448
    %v487 = vunpack.c.l.b16 %v449
    %v488 = vunpack.c.l.b16 %v450
    %v489 = vunpack.c.l.b16 %v451
    %v490 = vunpack.c.l.b16 %v452
    %v491 = vunpack.c.l.b16 %v453
    %v492 = vunpack.c.l.b16 %v454
    %v493 = vunpack.c.l.b16 %v455
    %v494 = vunpack.c.l.b16 %v456
    %v495 = vunpack.c.l.b16 %v457
    %v496 = vunpack.c.l.b16 %v458
    %v497 = vunpack.c.l.b16 %v459
    %v498 = vunpack.c.l.b16 %v460
    %v499 = vunpack.c.l.b16 %v461
    %v500 = vunpack.c.l.b16 %v462
    %v501 = vpack.c.b16 %v486, %v485
    %v502 = vpack.c.b16 %v488, %v487
    %v503 = vpack.c.b16 %v490, %v489
    %v504 = vpack.c.b16 %v492, %v491
    %v505 = vpack.c.b16 %v494, %v493
    %v506 = vpack.c.b16 %v496, %v495
    %v507 = vpack.c.b16 %v498, %v497
    %v508 = vpack.c.b16 %v500, %v499
    %517 = vmatpush.bf16.msra.mxu0 %v508
    %518 = vmatpush.bf16.msra.mxu0 %v507
    %519 = vmatpush.bf16.msra.mxu0 %v506
    %520 = vmatpush.bf16.msra.mxu0 %v505
    %521 = vmatpush.bf16.msra.mxu0 %v504
    %522 = vmatpush.bf16.msra.mxu0 %v503
    %523 = vmatpush.bf16.msra.mxu0 %v502
    %524 = vmatpush.bf16.msra.mxu0 %v501
    %525 = vmatmul.bf16.gmra.mxu0 %v465
    %v526 = vpop.f32.mrf.mxu0
    %v527 = vadd.f32 %v467, %v526
    %v528 = vpop.f32.mrf.mxu0
    %529 = vdwg.mxu0
    %v530 = vmul.f32 %v527, 0.2
    %v531 = vmax.f32 %v527, %v530
    %s532 = scalar_lea.vmem [#allocation5], 384
    %v533 = vld [vmem:[%s532] sm:$0xf]
    %v534 = vld [vmem:[%s532 + $0x4] sm:$0xf]
    %v535 = vld [vmem:[%s532 + $0x8] sm:$0xf]
    %v536 = vld [vmem:[%s532 + $0xc] sm:$0xf]
    %v537 = vld [vmem:[%s532 + $0x10] sm:$0xf]
    %v538 = vld [vmem:[%s532 + $0x14] sm:$0xf]
    %v539 = vld [vmem:[%s532 + $0x18] sm:$0xf]
    %v540 = vld [vmem:[%s532 + $0x1c] sm:$0xf]
    %v541 = vld [vmem:[%s532 + $0x20] sm:$0xf]
    %v542 = vld [vmem:[%s532 + $0x24] sm:$0xf]
    %v543 = vld [vmem:[%s532 + $0x28] sm:$0xf]
    %v544 = vld [vmem:[%s532 + $0x2c] sm:$0xf]
    %v545 = vld [vmem:[%s532 + $0x30] sm:$0xf]
    %v546 = vld [vmem:[%s532 + $0x34] sm:$0xf]
    %v547 = vld [vmem:[%s532 + $0x38] sm:$0xf]
    %v548 = vld [vmem:[%s532 + $0x3c] sm:$0xf]
    %s549 = scalar_lea.vmem [#allocation7], 6
    %v550 = vld [vmem:[%s549] sm:$0x1]
    %v551 = vpack.c.bf16 %v531, %v531
    %v553 = vperm.slane %v550, 0
    %v571 = vunpack.c.l.b16 %v533
    %v572 = vunpack.c.l.b16 %v534
    %v573 = vunpack.c.l.b16 %v535
    %v574 = vunpack.c.l.b16 %v536
    %v575 = vunpack.c.l.b16 %v537
    %v576 = vunpack.c.l.b16 %v538
    %v577 = vunpack.c.l.b16 %v539
    %v578 = vunpack.c.l.b16 %v540
    %v579 = vunpack.c.l.b16 %v541
    %v580 = vunpack.c.l.b16 %v542
    %v581 = vunpack.c.l.b16 %v543
    %v582 = vunpack.c.l.b16 %v544
    %v583 = vunpack.c.l.b16 %v545
    %v584 = vunpack.c.l.b16 %v546
    %v585 = vunpack.c.l.b16 %v547
    %v586 = vunpack.c.l.b16 %v548
    %v587 = vpack.c.b16 %v572, %v571
    %v588 = vpack.c.b16 %v574, %v573
    %v589 = vpack.c.b16 %v576, %v575
    %v590 = vpack.c.b16 %v578, %v577
    %v591 = vpack.c.b16 %v580, %v579
    %v592 = vpack.c.b16 %v582, %v581
    %v593 = vpack.c.b16 %v584, %v583
    %v594 = vpack.c.b16 %v586, %v585
    %603 = vmatpush.bf16.msra.mxu0 %v594
    %604 = vmatpush.bf16.msra.mxu0 %v593
    %605 = vmatpush.bf16.msra.mxu0 %v592
    %606 = vmatpush.bf16.msra.mxu0 %v591
    %607 = vmatpush.bf16.msra.mxu0 %v590
    %608 = vmatpush.bf16.msra.mxu0 %v589
    %609 = vmatpush.bf16.msra.mxu0 %v588
    %610 = vmatpush.bf16.msra.mxu0 %v587
    %611 = vmatmul.bf16.gmra.mxu0 %v551
    %v612 = vpop.f32.mrf.mxu0
    %v613 = vadd.f32 %v553, %v612
    %v614 = vpop.f32.mrf.mxu0
    %615 = vdwg.mxu0
    %v616 = vmul.f32 %v613, 0.2
    %v617 = vmax.f32 %v613, %v616
    %s618 = scalar_lea.vmem [#allocation5], 448
    %v619 = vld [vmem:[%s618] sm:$0xf]
    %v620 = vld [vmem:[%s618 + $0x4] sm:$0xf]
    %v621 = vld [vmem:[%s618 + $0x8] sm:$0xf]
    %v622 = vld [vmem:[%s618 + $0xc] sm:$0xf]
    %v623 = vld [vmem:[%s618 + $0x10] sm:$0xf]
    %v624 = vld [vmem:[%s618 + $0x14] sm:$0xf]
    %v625 = vld [vmem:[%s618 + $0x18] sm:$0xf]
    %v626 = vld [vmem:[%s618 + $0x1c] sm:$0xf]
    %v627 = vld [vmem:[%s618 + $0x20] sm:$0xf]
    %v628 = vld [vmem:[%s618 + $0x24] sm:$0xf]
    %v629 = vld [vmem:[%s618 + $0x28] sm:$0xf]
    %v630 = vld [vmem:[%s618 + $0x2c] sm:$0xf]
    %v631 = vld [vmem:[%s618 + $0x30] sm:$0xf]
    %v632 = vld [vmem:[%s618 + $0x34] sm:$0xf]
    %v633 = vld [vmem:[%s618 + $0x38] sm:$0xf]
    %v634 = vld [vmem:[%s618 + $0x3c] sm:$0xf]
    %s635 = scalar_lea.vmem [#allocation7], 7
    %v636 = vld [vmem:[%s635] sm:$0x1]
    %v637 = vpack.c.bf16 %v617, %v617
    %v639 = vperm.slane %v636, 0
    %v657 = vunpack.c.l.b16 %v619
    %v658 = vunpack.c.l.b16 %v620
    %v659 = vunpack.c.l.b16 %v621
    %v660 = vunpack.c.l.b16 %v622
    %v661 = vunpack.c.l.b16 %v623
    %v662 = vunpack.c.l.b16 %v624
    %v663 = vunpack.c.l.b16 %v625
    %v664 = vunpack.c.l.b16 %v626
    %v665 = vunpack.c.l.b16 %v627
    %v666 = vunpack.c.l.b16 %v628
    %v667 = vunpack.c.l.b16 %v629
    %v668 = vunpack.c.l.b16 %v630
    %v669 = vunpack.c.l.b16 %v631
    %v670 = vunpack.c.l.b16 %v632
    %v671 = vunpack.c.l.b16 %v633
    %v672 = vunpack.c.l.b16 %v634
    %v673 = vpack.c.b16 %v658, %v657
    %v674 = vpack.c.b16 %v660, %v659
    %v675 = vpack.c.b16 %v662, %v661
    %v676 = vpack.c.b16 %v664, %v663
    %v677 = vpack.c.b16 %v666, %v665
    %v678 = vpack.c.b16 %v668, %v667
    %v679 = vpack.c.b16 %v670, %v669
    %v680 = vpack.c.b16 %v672, %v671
    %689 = vmatpush.bf16.msra.mxu0 %v680
    %690 = vmatpush.bf16.msra.mxu0 %v679
    %691 = vmatpush.bf16.msra.mxu0 %v678
    %692 = vmatpush.bf16.msra.mxu0 %v677
    %693 = vmatpush.bf16.msra.mxu0 %v676
    %694 = vmatpush.bf16.msra.mxu0 %v675
    %695 = vmatpush.bf16.msra.mxu0 %v674
    %696 = vmatpush.bf16.msra.mxu0 %v673
    %697 = vmatmul.bf16.gmra.mxu0 %v637
    %v698 = vpop.f32.mrf.mxu0
    %v699 = vadd.f32 %v639, %v698
    %v700 = vpop.f32.mrf.mxu0
    %701 = vdwg.mxu0
    %vm702 = vcmask 56320
    %v703 = vsel %vm702, %v699, -inf
    %704 = vmax.xlane.f32.xlu0 %v703
    %v705 = vpop.xlane.xlu0 %704
    %v706 = vsub.f32 %v699, %v705
    %v707 = vmul.f32 %v706, 1.442695
    %v708 = vpow.pop %v707
    %v709 = vsel %vm702, %v708, 0.0
    %710 = vadd.xlane.f32.xlu0 %v709
    %v711 = vpop.xlane.xlu0 %710
    %v712 = vlog2.pop %v711
    %v713 = vmul.f32 %v712, 0.6931472
    %v714 = vsub.f32 %v706, %v713
    %715 = vst.msk [vmem:[#allocation8] sm:$0xff] %vm702, %v714
    // Predicated region
    $region26: #{tpu_custom_call.1} parent=1 // pred_check
      _
    $region27: #{tpu_custom_call.1} parent=1 // pred_check_branch
      %717 = sbr.rel (0) target = $region29
    $region28: #{tpu_custom_call.1} parent=1 // pred_region
      %719 = vsyncadd [#allocation4], 0
      %s721 = sshll.u32 [#allocation8], 4
      %s722 = int_to_ptr.vmem [resolvable:$true] %s721
      %s723 = sshll.u32 %s3, 4
      %s724 = int_to_ptr.hbm [resolvable:$true] %s723
      %726 = dma.vmem_to_hbm [thread:$0]  %s722, 128, %s724, [#allocation4]
    $region29: #{tpu_custom_call.1} parent=1 // pred_fallthru
      _
    // Predicated region
    $region30: #{tpu_custom_call.1} parent=1 // pred_check
      _
    $region31: #{tpu_custom_call.1} parent=1 // pred_check_branch
      %728 = sbr.rel (0) target = $region33
    $region32: #{tpu_custom_call.1} parent=1 // pred_region
      %730 = dma.done [#allocation4], 128
    $region33: #{tpu_custom_call.1} parent=1 // pred_fallthru
      _
    %731 = vsyncpa [#allocation3], 1
    %732 = vsyncpa [#allocation6], 1
    %733 = vsyncpa [#allocation4], 1

</llo_original>
